<compile_context>
chip_gen: v7x
topology: tpu7x:2x2x1
jax: 0.10.0
libtpu: 0.0.40
codegen_flags: <defaults>
</compile_context>

<pallas_src>
import functools

import jax
import jax.numpy as jnp
from jax.experimental import pallas as pl
from jax.experimental.pallas import tpu as pltpu

_LANE_PAD = 256        # pad hidden/output lane dims to 256 (v6e/v7x MXU width)
_MiB = 1 << 20


def _round_up(n, m):
    return ((n + m - 1) // m) * m


# ---------------------------------------------------------------------------
# Fused kernel: relu(x @ W1T + b1) @ W2T + b2 for one row tile (both weight
# matrices resident in VMEM, single-buffered).
# ---------------------------------------------------------------------------
def _fused_kernel(x_ref, w1_ref, b1_ref, w2_ref, b2_ref, o_ref):
    # x_ref: (tm, K)   w1_ref: (K, Hp)   b1_ref: (1, Hp)
    # w2_ref: (Hp, Op) b2_ref: (1, Op)   o_ref: (tm, Op)
    h = jnp.dot(x_ref[...], w1_ref[...], preferred_element_type=jnp.float32)
    h = jnp.maximum(h + b1_ref[...], 0.0)                       # bias + ReLU in f32
    y = jnp.dot(h.astype(w2_ref.dtype), w2_ref[...],
                preferred_element_type=jnp.float32)
    o_ref[...] = (y + b2_ref[...]).astype(o_ref.dtype)          # no final ReLU


# ---------------------------------------------------------------------------
# VMEM-constrained fallback: W1 resident, W2 streamed in (Hp, tn) tiles along
# an inner "arbitrary" axis; hidden activation cached in a VMEM scratch.
# ---------------------------------------------------------------------------
def _stream_kernel(x_ref, w1_ref, b1_ref, w2_ref, b2_ref, o_ref, h_ref):
    @pl.when(pl.program_id(1) == 0)
    def _():
        h = jnp.dot(x_ref[...], w1_ref[...], preferred_element_type=jnp.float32)
        h_ref[...] = jnp.maximum(h + b1_ref[...], 0.0).astype(h_ref.dtype)

    y = jnp.dot(h_ref[...], w2_ref[...], preferred_element_type=jnp.float32)
    o_ref[...] = (y + b2_ref[...]).astype(o_ref.dtype)


def simple_classifier_pallas(x2d, w1_t, b1, w2_t, b2, *,
                             tm_cap=512, vmem_budget_bytes=48 * _MiB,
                             force_stream=False):
    """logits = relu(x2d @ w1_t + b1) @ w2_t + b2.

    x2d: (N, K); w1_t: (K, Hp); b1: (1, Hp); w2_t: (Hp, Op); b2: (1, Op).
    Hp/Op are already padded to multiples of 256.  Returns (N, Op) f32.
    """
    N, K = x2d.shape
    Hp = w1_t.shape[1]
    Op = w2_t.shape[1]
    x_bytes = x2d.dtype.itemsize
    w_bytes = w1_t.dtype.itemsize

    # Balanced row tile: multiple of 16 (bf16 sublane packing), >= 2 tiles when
    # the batch allows so the "parallel" axis feeds both v7x TensorCores, and
    # padding per tile is bounded by the alignment (not tm-1 garbage rows).
    row_align = 16 if x_bytes == 2 else 8
    n_tiles = pl.cdiv(N, tm_cap)
    if n_tiles < 2 and N >= 2 * row_align:
        n_tiles = 2
    tm = _round_up(pl.cdiv(N, n_tiles), row_align)
    Np = _round_up(N, tm)
    if Np != N:
        x2d = jnp.pad(x2d, ((0, Np - N), (0, 0)))   # zero rows; sliced off below
    grid_rows = Np // tm

    cost = pl.CostEstimate(
        flops=2 * Np * (K * Hp + Hp * Op),
        transcendentals=0,
        bytes_accessed=(Np * K * x_bytes + (K * Hp + Hp * Op) * w_bytes
                        + (Hp + Op) * 4 + Np * Op * 4),
    )

    # Residency estimate for the fused path: double-buffered x/out tiles,
    # single-buffered weights/biases, plus the f32 hidden intermediate.
    fused_vmem = (2 * tm * K * x_bytes
                  + K * Hp * w_bytes + Hp * 4
                  + Hp * Op * w_bytes + Op * 4
                  + 2 * tm * Op * 4
                  + tm * Hp * 4)

    if not force_stream and fused_vmem + 2 * _MiB <= vmem_budget_bytes:
        vmem_limit = min(fused_vmem + 8 * _MiB, 64 * _MiB)
        out = pl.pallas_call(
            _fused_kernel,
            out_shape=jax.ShapeDtypeStruct((Np, Op), jnp.float32),
            grid_spec=pltpu.PrefetchScalarGridSpec(
                num_scalar_prefetch=0,
                grid=(grid_rows,),
                in_specs=[
                    pl.BlockSpec((tm, K), lambda i: (i, 0)),        # x row tile
                    pl.BlockSpec((K, Hp), lambda i: (0, 0),         # W1^T resident
                                 pipeline_mode=pl.Buffered(1)),
                    pl.BlockSpec((1, Hp), lambda i: (0, 0),         # b1 resident
                                 pipeline_mode=pl.Buffered(1)),
                    pl.BlockSpec((Hp, Op), lambda i: (0, 0),        # W2^T resident
                                 pipeline_mode=pl.Buffered(1)),
                    pl.BlockSpec((1, Op), lambda i: (0, 0),         # b2 resident
                                 pipeline_mode=pl.Buffered(1)),
                ],
                out_specs=pl.BlockSpec((tm, Op), lambda i: (i, 0)),
            ),
            compiler_params=pltpu.CompilerParams(
                dimension_semantics=("parallel",),
                vmem_limit_bytes=vmem_limit,
            ),
            cost_estimate=cost,
        )(x2d, w1_t, b1, w2_t, b2)
        return out[:N]

    # --- Fallback: stream W2 over output tiles (keeps peak VMEM ~ W1 + 2*Hp*tn).
    tn = 512 if Op % 512 == 0 else 256
    stream_vmem = (2 * tm * K * x_bytes
                   + K * Hp * w_bytes + Hp * 4
                   + 2 * Hp * tn * w_bytes + 2 * tn * 4
                   + 2 * tm * tn * 4
                   + tm * Hp * w_bytes)
    vmem_limit = min(stream_vmem + 8 * _MiB, 64 * _MiB)
    out = pl.pallas_call(
        _stream_kernel,
        out_shape=jax.ShapeDtypeStruct((Np, Op), jnp.float32),
        grid_spec=pltpu.PrefetchScalarGridSpec(
            num_scalar_prefetch=0,
            grid=(grid_rows, Op // tn),
            in_specs=[
                pl.BlockSpec((tm, K), lambda i, j: (i, 0)),         # x row tile
                pl.BlockSpec((K, Hp), lambda i, j: (0, 0),          # W1^T resident
                             pipeline_mode=pl.Buffered(1)),
                pl.BlockSpec((1, Hp), lambda i, j: (0, 0),          # b1 resident
                             pipeline_mode=pl.Buffered(1)),
                pl.BlockSpec((Hp, tn), lambda i, j: (0, j)),        # W2^T streamed
                pl.BlockSpec((1, tn), lambda i, j: (0, j)),         # b2 streamed
            ],
            out_specs=pl.BlockSpec((tm, tn), lambda i, j: (i, j)),
            scratch_shapes=[pltpu.VMEM((tm, Hp), w1_t.dtype)],      # cached hidden
        ),
        compiler_params=pltpu.CompilerParams(
            dimension_semantics=("parallel", "arbitrary"),
            vmem_limit_bytes=vmem_limit,
        ),
        cost_estimate=cost,
    )(x2d, w1_t, b1, w2_t, b2)
    return out[:N]


# ---------------------------------------------------------------------------
# Parameter construction / folding (mimics weight_norm(nn.Linear, dim=None)).
# ---------------------------------------------------------------------------
def init_simple_classifier_params(key, in_dim, hid_dim, out_dim):
    """Per layer store (v, g, b); effective weight W = g * v / ||v||_F."""
    params = []
    for d_in, d_out in ((in_dim, hid_dim), (hid_dim, out_dim)):
        key, kv, kb, kg = jax.random.split(key, 4)
        bound = 1.0 / jnp.sqrt(d_in)
        v = jax.random.uniform(kv, (d_out, d_in), jnp.float32, -bound, bound)
        b = jax.random.uniform(kb, (d_out,), jnp.float32, -bound, bound)
        # torch init sets g = ||v||; perturb so the weight-norm scaling path is
        # actually exercised by the self-test (otherwise W == v exactly).
        g = jnp.linalg.norm(v) * (0.5 + jax.random.uniform(kg, (), jnp.float32))
        params.append((v, g, b))
    return params


def prepare_folded_params(params, *, weight_dtype=jnp.bfloat16):
    """Fold the scalar weight-norm scale into the weights ONCE, transpose to
    (in, out), cast to bf16 (f32 accumulation in the kernel), and zero-pad the
    lane dims to multiples of 256 for full MXU tiles and unmasked stores."""
    (v1, g1, b1), (v2, g2, b2) = params
    w1 = (g1 / jnp.linalg.norm(v1)) * v1            # (hid, in)
    w2 = (g2 / jnp.linalg.norm(v2)) * v2            # (out, hid)
    hid, in_dim = w1.shape
    out, _ = w2.shape
    Hp = _round_up(hid, _LANE_PAD)
    Op = _round_up(out, _LANE_PAD)
    w1_t = jnp.zeros((in_dim, Hp), weight_dtype).at[:, :hid].set(w1.T.astype(weight_dtype))
    b1_p = jnp.zeros((1, Hp), jnp.float32).at[0, :hid].set(b1)
    w2_t = jnp.zeros((Hp, Op), weight_dtype).at[:hid, :out].set(w2.T.astype(weight_dtype))
    b2_p = jnp.zeros((1, Op), jnp.float32).at[0, :out].set(b2)
    # Padded hidden columns: bias 0 -> ReLU(0)=0 and their W2 rows are 0, so
    # the padding is mathematically inert.
    return (w1_t, b1_p, w2_t, b2_p), int(out)


@functools.partial(jax.jit, static_argnames=("out_dim",))
def simple_classifier_forward(folded, x, out_dim):
    """SimpleClassifier.forward: logits = W2 @ relu(W1 @ x + b1) + b2."""
    # TODO(synk): training-mode nn.Dropout not implemented (identity at inference).
    w1_t, b1_p, w2_t, b2_p = folded
    lead = x.shape[:-1]
    h2d = x.reshape(-1, x.shape[-1]).astype(w1_t.dtype)   # bf16 row tiles (half DMA bytes)
    y = simple_classifier_pallas(h2d, w1_t, b1_p, w2_t, b2_p)
    return y[:, :out_dim].reshape(*lead, out_dim)


def simple_classifier_reference(params, x):
    (v1, g1, b1), (v2, g2, b2) = params
    w1 = (g1 / jnp.linalg.norm(v1)) * v1
    w2 = (g2 / jnp.linalg.norm(v2)) * v2
    h = jnp.maximum(x @ w1.T + b1, 0.0)
    return h @ w2.T + b2


if __name__ == "__main__":
    key = jax.random.PRNGKey(0)
    in_dim, hid_dim, out_dim = 32, 64, 16
    batch = 13                      # deliberately not a multiple of 8/16 -> exercises padding

    k_params, k_x = jax.random.split(key)
    params = init_simple_classifier_params(k_params, in_dim, hid_dim, out_dim)
    folded, out_dim_real = prepare_folded_params(params)
    x = jax.random.normal(k_x, (batch, in_dim), jnp.float32)

    ref = jax.block_until_ready(simple_classifier_reference(params, x))

    # Path 1: fused, weights resident.
    out = jax.block_until_ready(simple_classifier_forward(folded, x, out_dim_real))
    assert out.shape == (batch, out_dim), out.shape
    err = float(jnp.max(jnp.abs(out - ref)))
    assert err < 5e-2, err          # bf16 weights/activations vs f32 reference

    # Path 2: VMEM-constrained W2-streaming fallback (forced, to exercise it).
    w1_t, b1_p, w2_t, b2_p = folded
    x2d = x.astype(w1_t.dtype)
    out_s = simple_classifier_pallas(x2d, w1_t, b1_p, w2_t, b2_p, force_stream=True)
    out_s = jax.block_until_ready(out_s)[:, :out_dim_real]
    err_s = float(jnp.max(jnp.abs(out_s - ref)))
    assert err_s < 5e-2, err_s

    print("KERNEL_OK")
</pallas_src>

<mosaic_0001>
module attributes {stable_mosaic.version = 11 : i64} {
  func.func @_fused_kernel(%arg0: i32, %arg1: memref<16x32xbf16, #tpu.memory_space<vmem>>, %arg2: memref<32x256xbf16, #tpu.memory_space<vmem>>, %arg3: memref<1x256xf32, #tpu.memory_space<vmem>>, %arg4: memref<256x256xbf16, #tpu.memory_space<vmem>>, %arg5: memref<1x256xf32, #tpu.memory_space<vmem>>, %arg6: memref<16x256xf32, #tpu.memory_space<vmem>>) attributes {dimension_semantics = [#tpu.dimension_semantics<parallel>], iteration_bounds = array<i64: 1>, scalar_prefetch = 0 : i64, scratch_operands = 0 : i64, tpu.core_type = #tpu.core_type<tc>, window_params = [{transform_indices = @transform_0, window_bounds = array<i64: 16, 32>}, {pipeline_mode = #tpu.pipeline_mode<synchronous>, transform_indices = @transform_1, window_bounds = array<i64: 32, 256>}, {pipeline_mode = #tpu.pipeline_mode<synchronous>, transform_indices = @transform_2, window_bounds = array<i64: 1, 256>}, {pipeline_mode = #tpu.pipeline_mode<synchronous>, transform_indices = @transform_3, window_bounds = array<i64: 256, 256>}, {pipeline_mode = #tpu.pipeline_mode<synchronous>, transform_indices = @transform_4, window_bounds = array<i64: 1, 256>}, {transform_indices = @transform_5, window_bounds = array<i64: 16, 256>}]} {
    %c0 = arith.constant 0 : index
    %c0_0 = arith.constant 0 : index
    %0 = vector.load %arg1[%c0, %c0_0] : memref<16x32xbf16, #tpu.memory_space<vmem>>, vector<16x32xbf16>
    %c0_1 = arith.constant 0 : index
    %c0_2 = arith.constant 0 : index
    %1 = vector.load %arg2[%c0_1, %c0_2] : memref<32x256xbf16, #tpu.memory_space<vmem>>, vector<32x256xbf16>
    %cst = arith.constant dense<0.000000e+00> : vector<16x256xf32>
    %2 = tpu.matmul %0, %1, %cst {dimension_numbers = #tpu.dot_dimension_numbers<[1], [0], [0], [1], [0, 0, 1, 1], [], []>} : vector<16x32xbf16>, vector<32x256xbf16>, vector<16x256xf32> -> vector<16x256xf32>
    %c0_3 = arith.constant 0 : index
    %c0_4 = arith.constant 0 : index
    %3 = vector.load %arg3[%c0_3, %c0_4] : memref<1x256xf32, #tpu.memory_space<vmem>>, vector<1x256xf32>
    %4 = vector.broadcast %3 : vector<1x256xf32> to vector<16x256xf32>
    %5 = arith.addf %2, %4 : vector<16x256xf32>
    %cst_5 = arith.constant 0.000000e+00 : f32
    %6 = vector.broadcast %cst_5 : f32 to vector<16x256xf32>
    %7 = arith.maximumf %5, %6 : vector<16x256xf32>
    %8 = arith.truncf %7 : vector<16x256xf32> to vector<16x256xbf16>
    %c0_6 = arith.constant 0 : index
    %c0_7 = arith.constant 0 : index
    %9 = vector.load %arg4[%c0_6, %c0_7] : memref<256x256xbf16, #tpu.memory_space<vmem>>, vector<256x256xbf16>
    %cst_8 = arith.constant dense<0.000000e+00> : vector<16x256xf32>
    %10 = tpu.matmul %8, %9, %cst_8 {dimension_numbers = #tpu.dot_dimension_numbers<[1], [0], [0], [1], [0, 0, 1, 1], [], []>} : vector<16x256xbf16>, vector<256x256xbf16>, vector<16x256xf32> -> vector<16x256xf32>
    %c0_9 = arith.constant 0 : index
    %c0_10 = arith.constant 0 : index
    %11 = vector.load %arg5[%c0_9, %c0_10] : memref<1x256xf32, #tpu.memory_space<vmem>>, vector<1x256xf32>
    %12 = vector.broadcast %11 : vector<1x256xf32> to vector<16x256xf32>
    %13 = arith.addf %10, %12 : vector<16x256xf32>
    %c0_11 = arith.constant 0 : index
    %c0_12 = arith.constant 0 : index
    %14 = vector.load %arg6[%c0_11, %c0_12] : memref<16x256xf32, #tpu.memory_space<vmem>>, vector<16x256xf32>
    tpu.vector_store %arg6[%c0_11, %c0_12], %13 {strides = array<i32>} : memref<16x256xf32, #tpu.memory_space<vmem>>, vector<16x256xf32>,
    return
  }
  func.func @transform_0(%arg0: i32) -> (i32, i32) {
    %c0_i32 = arith.constant 0 : i32
    %c0_i32_0 = arith.constant 0 : i32
    return %arg0, %c0_i32 : i32, i32
  }
  func.func @transform_1(%arg0: i32) -> (i32, i32) {
    %c0_i32 = arith.constant 0 : i32
    %c0_i32_0 = arith.constant 0 : i32
    %c0_i32_1 = arith.constant 0 : i32
    return %c0_i32, %c0_i32_0 : i32, i32
  }
  func.func @transform_2(%arg0: i32) -> (i32, i32) {
    %c0_i32 = arith.constant 0 : i32
    %c0_i32_0 = arith.constant 0 : i32
    %c0_i32_1 = arith.constant 0 : i32
    return %c0_i32, %c0_i32_0 : i32, i32
  }
  func.func @transform_3(%arg0: i32) -> (i32, i32) {
    %c0_i32 = arith.constant 0 : i32
    %c0_i32_0 = arith.constant 0 : i32
    %c0_i32_1 = arith.constant 0 : i32
    return %c0_i32, %c0_i32_0 : i32, i32
  }
  func.func @transform_4(%arg0: i32) -> (i32, i32) {
    %c0_i32 = arith.constant 0 : i32
    %c0_i32_0 = arith.constant 0 : i32
    %c0_i32_1 = arith.constant 0 : i32
    return %c0_i32, %c0_i32_0 : i32, i32
  }
  func.func @transform_5(%arg0: i32) -> (i32, i32) {
    %c0_i32 = arith.constant 0 : i32
    %c0_i32_0 = arith.constant 0 : i32
    return %arg0, %c0_i32 : i32, i32
  }
}

</mosaic_0001>

<llo_original>
// kernel: simple_classifier_forward.1
$region0: #{simple_classifier_forward.1}
  #allocation0 [shape = 'u32[]', space=smem, size = 0x4, offset = 0x4, fixed_abs, tag = 'smem constant byte address 0x4 - core index']
  #allocation1 [shape = 'u32[144,128]{1,0:T(1,128)}', space=vmem, size = 0x12000, scoped, tag = 'internal scratch']
  %s0 = inlined_call_operand.vmem [shape: bf16[16,32], index: 0, kind: input, shape index: {}]
  %s1 = inlined_call_operand.vmem [shape: bf16[32,256], index: 1, kind: input, shape index: {}]
  %s2 = inlined_call_operand.vmem [shape: f32[1,256], index: 2, kind: input, shape index: {}]
  %s3 = inlined_call_operand.hbm [shape: bf16[256,256], index: 3, kind: input, shape index: {}]
  %s4 = inlined_call_operand.vmem [shape: f32[1,256], index: 4, kind: input, shape index: {}]
  %s5 = inlined_call_operand.vmem [shape: f32[16,256], index: 5, kind: output, shape index: {}]
  %s6 = sld [smem:[#allocation0]]
  $region34: #{simple_classifier_forward.1} parent=0
    _
  %s8 = ssub.s32 1, %s6
  %s9 = scalar_select 0, %s8, %s6
  $region1: #{simple_classifier_forward.1} parent=0
    #allocation2 [shape = 'u8[131072]{0}', space=vmem, size = 0x20000, scoped, tag = 'input window, operand 3, single buffered']
    #allocation3 [shape = 's32[1]{0}', space=sflag, size = 0x4, scoped, tag = 'scoped memory for simple_classifier_forward.1']
    %10 = vsyncpa [#allocation3], 0
    // Predicated region
    $region2: #{simple_classifier_forward.1} parent=1 // pred_check
      _
    $region3: #{simple_classifier_forward.1} parent=1 // pred_check_branch
      %12 = sbr.rel (0) target = $region5
    $region4: #{simple_classifier_forward.1} parent=1 // pred_region
      _
    $region5: #{simple_classifier_forward.1} parent=1 // pred_fallthru
      _
    // Predicated region
    $region6: #{simple_classifier_forward.1} parent=1 // pred_check
      _
    $region7: #{simple_classifier_forward.1} parent=1 // pred_check_branch
      %14 = sbr.rel (0) target = $region9
    $region8: #{simple_classifier_forward.1} parent=1 // pred_region
      _
    $region9: #{simple_classifier_forward.1} parent=1 // pred_fallthru
      _
    // Predicated region
    $region10: #{simple_classifier_forward.1} parent=1 // pred_check
      _
    $region11: #{simple_classifier_forward.1} parent=1 // pred_check_branch
      %16 = sbr.rel (0) target = $region13
    $region12: #{simple_classifier_forward.1} parent=1 // pred_region
      _
    $region13: #{simple_classifier_forward.1} parent=1 // pred_fallthru
      _
    // Predicated region
    $region14: #{simple_classifier_forward.1} parent=1 // pred_check
      _
    $region15: #{simple_classifier_forward.1} parent=1 // pred_check_branch
      %18 = sbr.rel (0) target = $region17
    $region16: #{simple_classifier_forward.1} parent=1 // pred_region
      %s20 = ssub.s32 4096, 4096
      %21 = vsyncadd [#allocation3], %s20
      %s22 = sshll.u32 [#allocation2], 4
      %s23 = int_to_ptr.vmem [resolvable:$true] %s22
      %28 = dma.hbm_to_vmem [thread:$0]  %s3, 4096, %s23, [#allocation3], 128, 128, 8
    $region17: #{simple_classifier_forward.1} parent=1 // pred_fallthru
      _
    // Predicated region
    $region18: #{simple_classifier_forward.1} parent=1 // pred_check
      _
    $region19: #{simple_classifier_forward.1} parent=1 // pred_check_branch
      %30 = sbr.rel (0) target = $region21
    $region20: #{simple_classifier_forward.1} parent=1 // pred_region
      _
    $region21: #{simple_classifier_forward.1} parent=1 // pred_fallthru
      _
    // Predicated region
    $region22: #{simple_classifier_forward.1} parent=1 // pred_check
      _
    $region23: #{simple_classifier_forward.1} parent=1 // pred_check_branch
      %32 = sbr.rel (0) target = $region25
    $region24: #{simple_classifier_forward.1} parent=1 // pred_region
      %33 = dma.done [#allocation3], 4096
    $region25: #{simple_classifier_forward.1} parent=1 // pred_fallthru
      _
    %v35 = vld [vmem:[%s0] sm:$0xf]
    %v36 = vld [vmem:[%s0 + $0x4] sm:$0xf]
    %v37 = vld [vmem:[%s1] sm:$0xff]
    %v38 = vld [vmem:[%s1 + $0x8] sm:$0xff]
    %v39 = vld [vmem:[%s1 + $0x10] sm:$0xff]
    %v40 = vld [vmem:[%s1 + $0x18] sm:$0xff]
    %v41 = vld [vmem:[%s2] sm:$0x3]
    %v43 = vlaneseq
    %v44 = vshrl.u32 %v43, 7
    %v45 = vsub.s32 0, %v44
    %v46 = vrot.slane %v41, %v45
    %v47 = vlaneseq
    %v48 = vshrl.u32 %v47, 7
    %v49 = vsub.s32 1, %v48
    %v50 = vrot.slane %v41, %v49
    %v55 = vunpack.c.l.b16 %v35
    %v56 = vunpack.c.l.b16 %v36
    %v57 = vpack.c.b16 %v56, %v55
    %v62 = vunpack.c.l.b16 %v37
    %v63 = vunpack.c.h.b16 %v37
    %v64 = vunpack.c.l.b16 %v38
    %v65 = vunpack.c.h.b16 %v38
    %v66 = vunpack.c.l.b16 %v39
    %v67 = vunpack.c.h.b16 %v39
    %v68 = vunpack.c.l.b16 %v40
    %v69 = vunpack.c.h.b16 %v40
    %v70 = vpack.c.b16 %v64, %v62
    %v71 = vpack.c.b16 %v65, %v63
    %v72 = vpack.c.b16 %v68, %v66
    %v73 = vpack.c.b16 %v69, %v67
    %vm78 = vcmask 261120
    %v80 = vsel %vm78, %v57, 0
    %82 = vmatprep.subr.bf16.mxu0 %v71
    %83 = vmatpush1.bf16.msra.mxu0 %v70
    %84 = vmatprep.subr.bf16.mxu0 %v73
    %85 = vmatpush1.bf16.msra.mxu0 %v72
    %86 = vmatprep.subr.bf16.mxu0 0
    %87 = vmatpush1.bf16.msra.mxu0 0
    %88 = vmatprep.subr.bf16.mxu0 0
    %89 = vmatpush1.bf16.msra.mxu0 0
    %90 = vmatprep.subr.bf16.mxu0 0
    %91 = vmatpush1.bf16.msra.mxu0 0
    %92 = vmatprep.subr.bf16.mxu0 0
    %93 = vmatpush1.bf16.msra.mxu0 0
    %94 = vmatprep.subr.bf16.mxu0 0
    %95 = vmatpush1.bf16.msra.mxu0 0
    %96 = vmatprep.subr.bf16.mxu0 0
    %97 = vmatpush1.bf16.msra.mxu0 0
    %98 = vmatprep.subr.bf16.mxu0 0
    %99 = vmatpush1.bf16.msra.mxu0 0
    %100 = vmatprep.subr.bf16.mxu0 0
    %101 = vmatpush1.bf16.msra.mxu0 0
    %102 = vmatprep.subr.bf16.mxu0 0
    %103 = vmatpush1.bf16.msra.mxu0 0
    %104 = vmatprep.subr.bf16.mxu0 0
    %105 = vmatpush1.bf16.msra.mxu0 0
    %106 = vmatprep.subr.bf16.mxu0 0
    %107 = vmatpush1.bf16.msra.mxu0 0
    %108 = vmatprep.subr.bf16.mxu0 0
    %109 = vmatpush1.bf16.msra.mxu0 0
    %110 = vmatprep.subr.bf16.mxu0 0
    %111 = vmatpush1.bf16.msra.mxu0 0
    %112 = vmatprep.subr.bf16.mxu0 0
    %113 = vmatpush1.bf16.msra.mxu0 0
    %114 = vmatprep.mubr.bf16.mxu0 0
    %115 = vmatmul.mubr.bf16.gmra.mrb[0].mxu0 %v80
    %v116 = vpop.f32.mrb[0].mxu0
    %v117 = vadd.f32 %v46, %v116
    %v118 = vpop.f32.mrb[0].mxu0
    %v119 = vadd.f32 %v50, %v118
    %v120 = vpop.f32.mrb[0].mxu0
    %v121 = vadd.f32 %v46, %v120
    %v122 = vpop.f32.mrb[0].mxu0
    %v123 = vadd.f32 %v50, %v122
    %124 = vdwg.mxu0
    %v125 = vmax.f32 %v117, 0.0
    %v126 = vmax.f32 %v119, 0.0
    %v127 = vmax.f32 %v121, 0.0
    %v128 = vmax.f32 %v123, 0.0
    %v129 = vpack.c.bf16 %v127, %v125
    %v130 = vpack.c.bf16 %v128, %v126
    %v131 = vld [vmem:[#allocation2] sm:$0xff]
    %v132 = vld [vmem:[#allocation2 + $0x8] sm:$0xff]
    %v133 = vld [vmem:[#allocation2 + $0x10] sm:$0xff]
    %v134 = vld [vmem:[#allocation2 + $0x18] sm:$0xff]
    %v135 = vld [vmem:[#allocation2 + $0x20] sm:$0xff]
    %v136 = vld [vmem:[#allocation2 + $0x28] sm:$0xff]
    %v137 = vld [vmem:[#allocation2 + $0x30] sm:$0xff]
    %v138 = vld [vmem:[#allocation2 + $0x38] sm:$0xff]
    %v139 = vld [vmem:[#allocation2 + $0x40] sm:$0xff]
    %v140 = vld [vmem:[#allocation2 + $0x48] sm:$0xff]
    %v141 = vld [vmem:[#allocation2 + $0x50] sm:$0xff]
    %v142 = vld [vmem:[#allocation2 + $0x58] sm:$0xff]
    %v143 = vld [vmem:[#allocation2 + $0x60] sm:$0xff]
    %v144 = vld [vmem:[#allocation2 + $0x68] sm:$0xff]
    %v145 = vld [vmem:[#allocation2 + $0x70] sm:$0xff]
    %v146 = vld [vmem:[#allocation2 + $0x78] sm:$0xff]
    %v147 = vld [vmem:[#allocation2 + $0x80] sm:$0xff]
    %v148 = vld [vmem:[#allocation2 + $0x88] sm:$0xff]
    %v149 = vld [vmem:[#allocation2 + $0x90] sm:$0xff]
    %v150 = vld [vmem:[#allocation2 + $0x98] sm:$0xff]
    %v151 = vld [vmem:[#allocation2 + $0xa0] sm:$0xff]
    %v152 = vld [vmem:[#allocation2 + $0xa8] sm:$0xff]
    %v153 = vld [vmem:[#allocation2 + $0xb0] sm:$0xff]
    %v154 = vld [vmem:[#allocation2 + $0xb8] sm:$0xff]
    %v155 = vld [vmem:[#allocation2 + $0xc0] sm:$0xff]
    %v156 = vld [vmem:[#allocation2 + $0xc8] sm:$0xff]
    %v157 = vld [vmem:[#allocation2 + $0xd0] sm:$0xff]
    %v158 = vld [vmem:[#allocation2 + $0xd8] sm:$0xff]
    %v159 = vld [vmem:[#allocation2 + $0xe0] sm:$0xff]
    %v160 = vld [vmem:[#allocation2 + $0xe8] sm:$0xff]
    %v161 = vld [vmem:[#allocation2 + $0xf0] sm:$0xff]
    %v162 = vld [vmem:[#allocation2 + $0xf8] sm:$0xff]
    %v163 = vld [vmem:[%s4] sm:$0x3]
    %v165 = vlaneseq
    %v166 = vshrl.u32 %v165, 7
    %v167 = vsub.s32 0, %v166
    %v168 = vrot.slane %v163, %v167
    %v169 = vlaneseq
    %v170 = vshrl.u32 %v169, 7
    %v171 = vsub.s32 1, %v170
    %v172 = vrot.slane %v163, %v171
    %v207 = vunpack.c.l.b16 %v131
    %v208 = vunpack.c.h.b16 %v131
    %v209 = vunpack.c.l.b16 %v132
    %v210 = vunpack.c.h.b16 %v132
    %v211 = vunpack.c.l.b16 %v133
    %v212 = vunpack.c.h.b16 %v133
    %v213 = vunpack.c.l.b16 %v134
    %v214 = vunpack.c.h.b16 %v134
    %v215 = vunpack.c.l.b16 %v135
    %v216 = vunpack.c.h.b16 %v135
    %v217 = vunpack.c.l.b16 %v136
    %v218 = vunpack.c.h.b16 %v136
    %v219 = vunpack.c.l.b16 %v137
    %v220 = vunpack.c.h.b16 %v137
    %v221 = vunpack.c.l.b16 %v138
    %v222 = vunpack.c.h.b16 %v138
    %v223 = vunpack.c.l.b16 %v139
    %v224 = vunpack.c.h.b16 %v139
    %v225 = vunpack.c.l.b16 %v140
    %v226 = vunpack.c.h.b16 %v140
    %v227 = vunpack.c.l.b16 %v141
    %v228 = vunpack.c.h.b16 %v141
    %v229 = vunpack.c.l.b16 %v142
    %v230 = vunpack.c.h.b16 %v142
    %v231 = vunpack.c.l.b16 %v143
    %v232 = vunpack.c.h.b16 %v143
    %v233 = vunpack.c.l.b16 %v144
    %v234 = vunpack.c.h.b16 %v144
    %v235 = vunpack.c.l.b16 %v145
    %v236 = vunpack.c.h.b16 %v145
    %v237 = vunpack.c.l.b16 %v146
    %v238 = vunpack.c.h.b16 %v146
    %v239 = vunpack.c.l.b16 %v147
    %v240 = vunpack.c.h.b16 %v147
    %v241 = vunpack.c.l.b16 %v148
    %v242 = vunpack.c.h.b16 %v148
    %v243 = vunpack.c.l.b16 %v149
    %v244 = vunpack.c.h.b16 %v149
    %v245 = vunpack.c.l.b16 %v150
    %v246 = vunpack.c.h.b16 %v150
    %v247 = vunpack.c.l.b16 %v151
    %v248 = vunpack.c.h.b16 %v151
    %v249 = vunpack.c.l.b16 %v152
    %v250 = vunpack.c.h.b16 %v152
    %v251 = vunpack.c.l.b16 %v153
    %v252 = vunpack.c.h.b16 %v153
    %v253 = vunpack.c.l.b16 %v154
    %v254 = vunpack.c.h.b16 %v154
    %v255 = vunpack.c.l.b16 %v155
    %v256 = vunpack.c.h.b16 %v155
    %v257 = vunpack.c.l.b16 %v156
    %v258 = vunpack.c.h.b16 %v156
    %v259 = vunpack.c.l.b16 %v157
    %v260 = vunpack.c.h.b16 %v157
    %v261 = vunpack.c.l.b16 %v158
    %v262 = vunpack.c.h.b16 %v158
    %v263 = vunpack.c.l.b16 %v159
    %v264 = vunpack.c.h.b16 %v159
    %v265 = vunpack.c.l.b16 %v160
    %v266 = vunpack.c.h.b16 %v160
    %v267 = vunpack.c.l.b16 %v161
    %v268 = vunpack.c.h.b16 %v161
    %v269 = vunpack.c.l.b16 %v162
    %v270 = vunpack.c.h.b16 %v162
    %v271 = vpack.c.b16 %v209, %v207
    %v272 = vpack.c.b16 %v210, %v208
    %v273 = vpack.c.b16 %v213, %v211
    %v274 = vpack.c.b16 %v214, %v212
    %v275 = vpack.c.b16 %v217, %v215
    %v276 = vpack.c.b16 %v218, %v216
    %v277 = vpack.c.b16 %v221, %v219
    %v278 = vpack.c.b16 %v222, %v220
    %v279 = vpack.c.b16 %v225, %v223
    %v280 = vpack.c.b16 %v226, %v224
    %v281 = vpack.c.b16 %v229, %v227
    %v282 = vpack.c.b16 %v230, %v228
    %v283 = vpack.c.b16 %v233, %v231
    %v284 = vpack.c.b16 %v234, %v232
    %v285 = vpack.c.b16 %v237, %v235
    %v286 = vpack.c.b16 %v238, %v236
    %v287 = vpack.c.b16 %v241, %v239
    %v288 = vpack.c.b16 %v242, %v240
    %v289 = vpack.c.b16 %v245, %v243
    %v290 = vpack.c.b16 %v246, %v244
    %v291 = vpack.c.b16 %v249, %v247
    %v292 = vpack.c.b16 %v250, %v248
    %v293 = vpack.c.b16 %v253, %v251
    %v294 = vpack.c.b16 %v254, %v252
    %v295 = vpack.c.b16 %v257, %v255
    %v296 = vpack.c.b16 %v258, %v256
    %v297 = vpack.c.b16 %v261, %v259
    %v298 = vpack.c.b16 %v262, %v260
    %v299 = vpack.c.b16 %v265, %v263
    %v300 = vpack.c.b16 %v266, %v264
    %v301 = vpack.c.b16 %v269, %v267
    %v302 = vpack.c.b16 %v270, %v268
    %335 = vmatprep.subr.bf16.mxu0 %v272
    %336 = vmatpush1.bf16.msra.mxu0 %v271
    %337 = vmatprep.subr.bf16.mxu0 %v274
    %338 = vmatpush1.bf16.msra.mxu0 %v273
    %339 = vmatprep.subr.bf16.mxu0 %v276
    %340 = vmatpush1.bf16.msra.mxu0 %v275
    %341 = vmatprep.subr.bf16.mxu0 %v278
    %342 = vmatpush1.bf16.msra.mxu0 %v277
    %343 = vmatprep.subr.bf16.mxu0 %v280
    %344 = vmatpush1.bf16.msra.mxu0 %v279
    %345 = vmatprep.subr.bf16.mxu0 %v282
    %346 = vmatpush1.bf16.msra.mxu0 %v281
    %347 = vmatprep.subr.bf16.mxu0 %v284
    %348 = vmatpush1.bf16.msra.mxu0 %v283
    %349 = vmatprep.subr.bf16.mxu0 %v286
    %350 = vmatpush1.bf16.msra.mxu0 %v285
    %351 = vmatprep.subr.bf16.mxu0 %v288
    %352 = vmatpush1.bf16.msra.mxu0 %v287
    %353 = vmatprep.subr.bf16.mxu0 %v290
    %354 = vmatpush1.bf16.msra.mxu0 %v289
    %355 = vmatprep.subr.bf16.mxu0 %v292
    %356 = vmatpush1.bf16.msra.mxu0 %v291
    %357 = vmatprep.subr.bf16.mxu0 %v294
    %358 = vmatpush1.bf16.msra.mxu0 %v293
    %359 = vmatprep.subr.bf16.mxu0 %v296
    %360 = vmatpush1.bf16.msra.mxu0 %v295
    %361 = vmatprep.subr.bf16.mxu0 %v298
    %362 = vmatpush1.bf16.msra.mxu0 %v297
    %363 = vmatprep.subr.bf16.mxu0 %v300
    %364 = vmatpush1.bf16.msra.mxu0 %v299
    %365 = vmatprep.subr.bf16.mxu0 %v302
    %366 = vmatpush1.bf16.msra.mxu0 %v301
    %367 = vmatprep.mubr.bf16.mxu0 %v130
    %368 = vmatmul.mubr.bf16.gmra.mrb[0].mxu0 %v129
    %v369 = vpop.f32.mrb[0].mxu0
    %v370 = vadd.f32 %v168, %v369
    %v371 = vpop.f32.mrb[0].mxu0
    %v372 = vadd.f32 %v172, %v371
    %v373 = vpop.f32.mrb[0].mxu0
    %v374 = vadd.f32 %v168, %v373
    %v375 = vpop.f32.mrb[0].mxu0
    %v376 = vadd.f32 %v172, %v375
    %377 = vdwg.mxu0
    %378 = vst [vmem:[%s5] sm:$0xff] %v370
    %379 = vst [vmem:[%s5 + $0x8] sm:$0xff] %v372
    %380 = vst [vmem:[%s5 + $0x10] sm:$0xff] %v374
    %381 = vst [vmem:[%s5 + $0x18] sm:$0xff] %v376
    // Predicated region
    $region26: #{simple_classifier_forward.1} parent=1 // pred_check
      _
    $region27: #{simple_classifier_forward.1} parent=1 // pred_check_branch
      %383 = sbr.rel (0) target = $region29
    $region28: #{simple_classifier_forward.1} parent=1 // pred_region
      _
    $region29: #{simple_classifier_forward.1} parent=1 // pred_fallthru
      _
    // Predicated region
    $region30: #{simple_classifier_forward.1} parent=1 // pred_check
      _
    $region31: #{simple_classifier_forward.1} parent=1 // pred_check_branch
      %385 = sbr.rel (0) target = $region33
    $region32: #{simple_classifier_forward.1} parent=1 // pred_region
      _
    $region33: #{simple_classifier_forward.1} parent=1 // pred_fallthru
      _
    %386 = vsyncpa [#allocation3], 1

</llo_original>
